<compile_context>
chip_gen: v6e
topology: v6e:2x2x1
jax: 0.10.0
libtpu: 0.0.40
codegen_flags: <defaults>
</compile_context>

<pallas_src>
import jax
import jax.numpy as jnp
from jax import lax
from jax.experimental import pallas as pl
from jax.experimental.pallas import tpu as pltpu


def _round_up(v, m):
    return (v + m - 1) // m * m


def _cdiv(a, b):
    return -(-a // b)


def _make_mean_pool_kernel(n_nodes, tile_n, has_node_tail):
    """Kernel factory closing over static shape info (true N, node tile, tail?)."""

    def kernel(batch_ref, inv_ref, x_ref, o_ref, acc_ref):
        # grid = (feature axis [parallel], node/reduction axis [arbitrary])
        k = pl.program_id(1)
        b_pad = acc_ref.shape[0]

        @pl.when(k == 0)
        def _():
            acc_ref[...] = jnp.zeros_like(acc_ref)

        # One-hot in (graphs x nodes) orientation: graphs on sublanes, nodes
        # on lanes. Padded batch entries hold the sentinel b_pad, which never
        # matches the iota, so they contribute nothing.
        b_row = batch_ref[...]                                        # (1, tile_n)
        graph_iota = lax.broadcasted_iota(jnp.int32, (b_pad, tile_n), 0)
        onehot = (b_row == graph_iota).astype(x_ref.dtype)            # (b_pad, tile_n)

        x_tile = x_ref[...]                                           # (tile_n, tile_f)
        if has_node_tail:
            # Last node tile reads past N: zero those rows so garbage (e.g.
            # NaN) cannot poison the f32 accumulator via 0 * NaN in the MXU.
            row_idx = k * tile_n + lax.broadcasted_iota(jnp.int32, (tile_n, 1), 0)
            x_tile = jnp.where(row_idx < n_nodes, x_tile, jnp.zeros_like(x_tile))

        # Segment sum on the MXU: (b_pad, tile_f) += onehot @ x_tile.
        acc_ref[...] += lax.dot_general(
            onehot,
            x_tile,
            dimension_numbers=(((1,), (0,)), ((), ())),
            preferred_element_type=jnp.float32,
        )

        @pl.when(k == pl.num_programs(1) - 1)
        def _():
            # Mean = sum * (1 / max(count, 1)); inv is precomputed in the wrapper.
            o_ref[...] = (acc_ref[...] * inv_ref[...]).astype(o_ref.dtype)

    return kernel


def mean_pool_layer(x, batch, num_graphs, *, tile_n=1024, tile_f=512):
    """JAX/Pallas equivalent of MeanPoolLayer.forward(x, batch) = global_mean_pool."""
    N, F = x.shape
    out_dtype = x.dtype
    x_item = jnp.dtype(x.dtype).itemsize
    out_item = jnp.dtype(out_dtype).itemsize

    # Graph rows padded to the output dtype's sublane multiple (8/16/32).
    sub = max(8, 32 // out_item)
    b_pad = _round_up(max(int(num_graphs), 1), sub)

    # Node tile: multiple of 128, no bigger than needed; cap the (b_pad, tile_n)
    # one-hot temporary for very large graph counts.
    tile_n = max(128, _round_up(min(tile_n, max(N, 1)), 128))
    tile_n = min(tile_n, _round_up(max(N, 1), 128))
    while b_pad * tile_n * x_item > (8 << 20) and tile_n > 128:
        tile_n = max(128, (tile_n // 2 // 128) * 128)
    grid_n = _cdiv(N, tile_n)
    n_pad = grid_n * tile_n

    # Feature tile: multiple of 128, <= default; split into >= 2 blocks when
    # possible so the parallel axis has work for v7x's second TensorCore.
    f_al = _round_up(F, 128)
    tile_f = max(128, _round_up(min(tile_f, f_al), 128))
    if _cdiv(F, tile_f) < 2 and tile_f > 128:
        tile_f = max(128, _round_up(tile_f // 2, 128))
    # Keep f32 accumulator + double-buffered output block modest for large b_pad.
    while 3 * b_pad * tile_f * 4 > (24 << 20) and tile_f > 128:
        tile_f = max(128, (tile_f // 2 // 128) * 128)
    grid_f = _cdiv(F, tile_f)

    # Batch ids: lane-dense single row, padded with the out-of-range sentinel
    # b_pad so tail rows select no graph. Only this tiny vector is padded.
    batch_i = batch.astype(jnp.int32)
    if n_pad != N:
        batch_i = jnp.pad(batch_i, (0, n_pad - N), constant_values=b_pad)
    batch_row = batch_i.reshape(1, n_pad)

    # Precompute per-graph 1 / max(count, 1) once (removes the per-step count matmul).
    counts = jnp.zeros((b_pad,), jnp.float32).at[batch.astype(jnp.int32)].add(1.0)
    inv_cnt = (1.0 / jnp.maximum(counts, 1.0)).reshape(b_pad, 1)

    # Explicit VMEM budget (double-buffered x/out blocks, acc scratch, small inputs).
    est = (2 * tile_n * tile_f * x_item          # x tiles (double-buffered)
           + 2 * b_pad * tile_f * out_item       # output block (double-buffered)
           + b_pad * tile_f * 4                  # f32 accumulator scratch
           + b_pad * tile_n * x_item             # one-hot temporary headroom
           + 2 * tile_n * 4                      # batch-id tiles
           + 2 * b_pad * 128 * 4)                # inv_cnt block (lane-padded)
    vmem_limit = int(min(max(2 * est, 32 << 20), 60 << 20))

    kernel = _make_mean_pool_kernel(N, tile_n, (N % tile_n) != 0)

    out = pl.pallas_call(
        kernel,
        out_shape=jax.ShapeDtypeStruct((b_pad, F), out_dtype),
        grid_spec=pltpu.PrefetchScalarGridSpec(
            num_scalar_prefetch=0,
            grid=(grid_f, grid_n),   # (parallel feature axis, reduction node axis)
            in_specs=[
                # Lane-dense batch-id row: one (1, tile_n) tile per node step.
                pl.BlockSpec((1, tile_n), lambda j, k: (0, k)),
                # Precomputed per-graph reciprocal counts, resident.
                pl.BlockSpec((b_pad, 1), lambda j, k: (0, 0)),
                # Node-feature tile (no HBM padding copy; tails masked in-kernel).
                pl.BlockSpec((tile_n, tile_f), lambda j, k: (k, j)),
            ],
            out_specs=pl.BlockSpec((b_pad, tile_f), lambda j, k: (0, j)),
            scratch_shapes=[
                pltpu.VMEM((b_pad, tile_f), jnp.float32),  # per-graph feature sums
            ],
        ),
        compiler_params=pltpu.CompilerParams(
            dimension_semantics=("parallel", "arbitrary"),
            vmem_limit_bytes=vmem_limit,
        ),
    )(batch_row, inv_cnt, x)

    return out[:num_graphs, :]


if __name__ == "__main__":
    key = jax.random.PRNGKey(0)
    kx, kb = jax.random.split(key)

    N, F, B = 32, 128, 8          # 32 nodes, 128 features, 8 graphs in the batch
    x = jax.random.normal(kx, (N, F), dtype=jnp.float32)
    # sorted graph ids (typical PyG batch vector); the kernel does not require sortedness
    batch = jnp.sort(jax.random.randint(kb, (N,), 0, B, dtype=jnp.int32))

    out = mean_pool_layer(x, batch, num_graphs=B)
    out = jax.block_until_ready(out)

    # pure-JAX reference: segment mean with count clamped to >= 1
    sums = jax.ops.segment_sum(x, batch, num_segments=B)
    counts = jax.ops.segment_sum(jnp.ones((N,), jnp.float32), batch, num_segments=B)
    ref = sums / jnp.maximum(counts, 1.0)[:, None]

    assert out.shape == (B, F)
    assert jnp.allclose(out, ref, atol=1e-5, rtol=1e-5), "mismatch vs segment-mean reference"

    print("KERNEL_OK")
</pallas_src>

<mosaic_0001>
module attributes {stable_mosaic.version = 11 : i64} {
  func.func @kernel(%arg0: i32, %arg1: i32, %arg2: memref<1x128xi32, #tpu.memory_space<vmem>>, %arg3: memref<8x1xf32, #tpu.memory_space<vmem>>, %arg4: memref<128x128xf32, #tpu.memory_space<vmem>>, %arg5: memref<8x128xf32, #tpu.memory_space<vmem>>, %arg6: memref<8x128xf32, #tpu.memory_space<vmem>>) attributes {dimension_semantics = [#tpu.dimension_semantics<parallel>, #tpu.dimension_semantics<arbitrary>], iteration_bounds = array<i64: 1, 1>, scalar_prefetch = 0 : i64, scratch_operands = 1 : i64, tpu.core_type = #tpu.core_type<tc>, window_params = [{transform_indices = @transform_0, window_bounds = array<i64: 1, 128>}, {pipeline_mode = #tpu.pipeline_mode<synchronous>, transform_indices = @transform_1, window_bounds = array<i64: 8, 1>}, {transform_indices = @transform_2, window_bounds = array<i64: 128, 128>}, {transform_indices = @transform_3, window_bounds = array<i64: 8, 128>}]} {
    %c0_i32 = arith.constant 0 : i32
    %0 = arith.cmpi eq, %arg1, %c0_i32 : i32
    %1 = arith.extui %0 : i1 to i32
    %c0_i32_0 = arith.constant 0 : i32
    %2 = arith.cmpi ne, %1, %c0_i32_0 : i32
    scf.if %2 {
      %cst_11 = arith.constant 0.000000e+00 : f32
      %27 = vector.broadcast %cst_11 : f32 to vector<8x128xf32>
      %c0_12 = arith.constant 0 : index
      %c0_13 = arith.constant 0 : index
      %28 = vector.load %arg6[%c0_12, %c0_13] : memref<8x128xf32, #tpu.memory_space<vmem>>, vector<8x128xf32>
      tpu.vector_store %arg6[%c0_12, %c0_13], %27 {strides = array<i32>} : memref<8x128xf32, #tpu.memory_space<vmem>>, vector<8x128xf32>,
    } else {
    }
    %c0 = arith.constant 0 : index
    %c0_1 = arith.constant 0 : index
    %3 = vector.load %arg2[%c0, %c0_1] : memref<1x128xi32, #tpu.memory_space<vmem>>, vector<1x128xi32>
    %4 = tpu.iota {dimensions = array<i32: 0>} : vector<8x128xi32>
    %5 = vector.broadcast %3 : vector<1x128xi32> to vector<8x128xi32>
    %6 = arith.cmpi eq, %5, %4 : vector<8x128xi32>
    %7 = arith.extui %6 : vector<8x128xi1> to vector<8x128xi32>
    %8 = arith.sitofp %7 : vector<8x128xi32> to vector<8x128xf32>
    %c0_2 = arith.constant 0 : index
    %c0_3 = arith.constant 0 : index
    %9 = vector.load %arg4[%c0_2, %c0_3] : memref<128x128xf32, #tpu.memory_space<vmem>>, vector<128x128xf32>
    %c128_i32 = arith.constant 128 : i32
    %10 = arith.muli %arg1, %c128_i32 : i32
    %11 = tpu.iota {dimensions = array<i32: 0>} : vector<128x1xi32>
    %12 = vector.broadcast %10 : i32 to vector<128x1xi32>
    %13 = arith.addi %12, %11 : vector<128x1xi32>
    %c32_i32 = arith.constant 32 : i32
    %14 = vector.broadcast %c32_i32 : i32 to vector<128x1xi32>
    %15 = arith.cmpi slt, %13, %14 : vector<128x1xi32>
    %cst = arith.constant 0.000000e+00 : f32
    %16 = vector.broadcast %cst : f32 to vector<128x128xf32>
    %17 = vector.shape_cast %15 : vector<128x1xi1> to vector<128x1xi1>
    %18 = vector.broadcast %17 : vector<128x1xi1> to vector<128x128xi1>
    %19 = arith.select %18, %9, %16 : vector<128x128xi1>, vector<128x128xf32>
    %c0_4 = arith.constant 0 : index
    %c0_5 = arith.constant 0 : index
    %20 = vector.load %arg6[%c0_4, %c0_5] : memref<8x128xf32, #tpu.memory_space<vmem>>, vector<8x128xf32>
    %cst_6 = arith.constant dense<0.000000e+00> : vector<8x128xf32>
    %21 = tpu.matmul %8, %19, %cst_6 {dimension_numbers = #tpu.dot_dimension_numbers<[1], [0], [0], [1], [0, 0, 1, 1], [], []>} : vector<8x128xf32>, vector<128x128xf32>, vector<8x128xf32> -> vector<8x128xf32>
    %22 = arith.addf %20, %21 : vector<8x128xf32>
    %c0_7 = arith.constant 0 : index
    %c0_8 = arith.constant 0 : index
    %23 = vector.load %arg6[%c0_7, %c0_8] : memref<8x128xf32, #tpu.memory_space<vmem>>, vector<8x128xf32>
    tpu.vector_store %arg6[%c0_7, %c0_8], %22 {strides = array<i32>} : memref<8x128xf32, #tpu.memory_space<vmem>>, vector<8x128xf32>,
    %c0_i32_9 = arith.constant 0 : i32
    %24 = arith.cmpi eq, %arg1, %c0_i32_9 : i32
    %25 = arith.extui %24 : i1 to i32
    %c0_i32_10 = arith.constant 0 : i32
    %26 = arith.cmpi ne, %25, %c0_i32_10 : i32
    scf.if %26 {
      %c0_11 = arith.constant 0 : index
      %c0_12 = arith.constant 0 : index
      %27 = vector.load %arg6[%c0_11, %c0_12] : memref<8x128xf32, #tpu.memory_space<vmem>>, vector<8x128xf32>
      %c0_13 = arith.constant 0 : index
      %c0_14 = arith.constant 0 : index
      %28 = vector.load %arg3[%c0_13, %c0_14] : memref<8x1xf32, #tpu.memory_space<vmem>>, vector<8x1xf32>
      %29 = vector.broadcast %28 : vector<8x1xf32> to vector<8x128xf32>
      %30 = arith.mulf %27, %29 : vector<8x128xf32>
      %c0_15 = arith.constant 0 : index
      %c0_16 = arith.constant 0 : index
      %31 = vector.load %arg5[%c0_15, %c0_16] : memref<8x128xf32, #tpu.memory_space<vmem>>, vector<8x128xf32>
      tpu.vector_store %arg5[%c0_15, %c0_16], %30 {strides = array<i32>} : memref<8x128xf32, #tpu.memory_space<vmem>>, vector<8x128xf32>,
    } else {
    }
    return
  }
  func.func @transform_0(%arg0: i32, %arg1: i32) -> (i32, i32) {
    %c0_i32 = arith.constant 0 : i32
    %c0_i32_0 = arith.constant 0 : i32
    return %c0_i32, %arg1 : i32, i32
  }
  func.func @transform_1(%arg0: i32, %arg1: i32) -> (i32, i32) {
    %c0_i32 = arith.constant 0 : i32
    %c0_i32_0 = arith.constant 0 : i32
    %c0_i32_1 = arith.constant 0 : i32
    return %c0_i32, %c0_i32_0 : i32, i32
  }
  func.func @transform_2(%arg0: i32, %arg1: i32) -> (i32, i32) {
    %c0_i32 = arith.constant 0 : i32
    return %arg1, %arg0 : i32, i32
  }
  func.func @transform_3(%arg0: i32, %arg1: i32) -> (i32, i32) {
    %c0_i32 = arith.constant 0 : i32
    %c0_i32_0 = arith.constant 0 : i32
    return %c0_i32, %arg0 : i32, i32
  }
}

</mosaic_0001>

<llo_original>
// kernel: tpu_custom_call.1
$region0: #{tpu_custom_call.1}
  #allocation0 [shape = 'u32[]', space=smem, size = 0x4, offset = 0x4, fixed_abs, tag = 'smem constant byte address 0x4 - core index']
  #allocation1 [shape = 'u32[144,128]{1,0:T(1,128)}', space=vmem, size = 0x12000, scoped, tag = 'internal scratch']
  #allocation2 [shape = 'f32[8,128]{1,0:T(8,128)}', space=vmem, size = 0x1000, scoped, tag = 'scratch operand']
  %s0 = inlined_call_operand.vmem [shape: s32[1,128], index: 0, kind: input, shape index: {}]
  %s1 = inlined_call_operand.vmem [shape: f32[8,1], index: 1, kind: input, shape index: {}]
  %s2 = inlined_call_operand.hbm [shape: f32[32,128], index: 2, kind: input, shape index: {}]
  %s3 = inlined_call_operand.hbm [shape: f32[8,128], index: 3, kind: output, shape index: {}]
  %s4 = sld [smem:[#allocation0]]
  $region34: #{tpu_custom_call.1} parent=0
    _
  %s6 = ssub.s32 1, %s4
  %s7 = scalar_select 0, %s6, %s4
  $region1: #{tpu_custom_call.1} parent=0
    #allocation3 [shape = 'u8[65536]{0}', space=vmem, size = 0x10000, scoped, tag = 'input window, operand 2, single buffered']
    #allocation4 [shape = 's32[1]{0}', space=sflag, size = 0x4, scoped, tag = 'scoped memory for tpu_custom_call.1']
    #allocation5 [shape = 's32[1]{0}', space=sflag, size = 0x4, scoped, tag = 'scoped memory for tpu_custom_call.1']
    #allocation6 [shape = 'u8[4096]{0}', space=vmem, size = 0x1000, scoped, tag = 'output window, operand 0, single buffered']
    %8 = vsyncpa [#allocation4], 0
    %9 = vsyncpa [#allocation5], 0
    // Predicated region
    $region2: #{tpu_custom_call.1} parent=1 // pred_check
      _
    $region3: #{tpu_custom_call.1} parent=1 // pred_check_branch
      %11 = sbr.rel (0) target = $region5
    $region4: #{tpu_custom_call.1} parent=1 // pred_region
      _
    $region5: #{tpu_custom_call.1} parent=1 // pred_fallthru
      _
    // Predicated region
    $region6: #{tpu_custom_call.1} parent=1 // pred_check
      _
    $region7: #{tpu_custom_call.1} parent=1 // pred_check_branch
      %13 = sbr.rel (0) target = $region9
    $region8: #{tpu_custom_call.1} parent=1 // pred_region
      _
    $region9: #{tpu_custom_call.1} parent=1 // pred_fallthru
      _
    // Predicated region
    $region10: #{tpu_custom_call.1} parent=1 // pred_check
      _
    $region11: #{tpu_custom_call.1} parent=1 // pred_check_branch
      %15 = sbr.rel (0) target = $region13
    $region12: #{tpu_custom_call.1} parent=1 // pred_region
      %s17 = ssub.s32 2048, 512
      %18 = vsyncadd [#allocation4], %s17
      %s19 = sshll.u32 [#allocation3], 4
      %s20 = int_to_ptr.vmem [resolvable:$true] %s19
      %25 = dma.hbm_to_vmem [thread:$0]  %s2, 512, %s20, [#allocation4], 128, 128, 8
    $region13: #{tpu_custom_call.1} parent=1 // pred_fallthru
      _
    // Predicated region
    $region14: #{tpu_custom_call.1} parent=1 // pred_check
      _
    $region15: #{tpu_custom_call.1} parent=1 // pred_check_branch
      %27 = sbr.rel (0) target = $region17
    $region16: #{tpu_custom_call.1} parent=1 // pred_region
      %28 = dma.done [#allocation4], 2048
    $region17: #{tpu_custom_call.1} parent=1 // pred_fallthru
      _
    %p29 = scmp.eq.s32.totalorder 0, 0
    // Predicated region
    $region18: #{tpu_custom_call.1} parent=1 // pred_check
      %p30 = pneg %p29
    $region19: #{tpu_custom_call.1} parent=1 // pred_check_branch
      %32 = sbr.rel (%p30) target = $region21
    $region20: #{tpu_custom_call.1} parent=1 // pred_region
      %33 = vst [vmem:[#allocation2] sm:$0xff] 0.0
    $region21: #{tpu_custom_call.1} parent=1 // pred_fallthru
      _
    %v34 = vld [vmem:[%s0] sm:$0x1]
    %v35 = vlaneseq
    %v36 = vshrl.u32 %v35, 7
    %v37 = vlaneseq
    %v38 = vshrl.u32 %v37, 7
    %v39 = vsub.s32 0, %v38
    %v40 = vrot.slane %v34, %v39
    %vm41 = vcmp.eq.s32.totalorder %v40, %v36
    %v42 = vsel %vm41, 1, 0
    %v43 = vcvt.s32.f32 %v42
    %v44 = vld [vmem:[#allocation3] sm:$0xff]
    %v45 = vld [vmem:[#allocation3 + $0x8] sm:$0xff]
    %v46 = vld [vmem:[#allocation3 + $0x10] sm:$0xff]
    %v47 = vld [vmem:[#allocation3 + $0x18] sm:$0xff]
    %v48 = vld [vmem:[#allocation3 + $0x20] sm:$0xff]
    %v49 = vld [vmem:[#allocation3 + $0x28] sm:$0xff]
    %v50 = vld [vmem:[#allocation3 + $0x30] sm:$0xff]
    %v51 = vld [vmem:[#allocation3 + $0x38] sm:$0xff]
    %v52 = vld [vmem:[#allocation3 + $0x40] sm:$0xff]
    %v53 = vld [vmem:[#allocation3 + $0x48] sm:$0xff]
    %v54 = vld [vmem:[#allocation3 + $0x50] sm:$0xff]
    %v55 = vld [vmem:[#allocation3 + $0x58] sm:$0xff]
    %v56 = vld [vmem:[#allocation3 + $0x60] sm:$0xff]
    %v57 = vld [vmem:[#allocation3 + $0x68] sm:$0xff]
    %v58 = vld [vmem:[#allocation3 + $0x70] sm:$0xff]
    %v59 = vld [vmem:[#allocation3 + $0x78] sm:$0xff]
    %s60 = smul.u32 0, 128
    %v61 = vadd.s32 %v36, 8
    %v62 = vadd.s32 %v36, 16
    %v63 = vadd.s32 %v36, 24
    %v64 = vadd.s32 %v36, 32
    %v65 = vadd.s32 %v36, 40
    %v66 = vadd.s32 %v36, 48
    %v67 = vadd.s32 %v36, 56
    %v68 = vadd.s32 %v36, 64
    %v69 = vadd.s32 %v36, 72
    %v70 = vadd.s32 %v36, 80
    %v71 = vadd.s32 %v36, 88
    %v72 = vadd.s32 %v36, 96
    %v73 = vadd.s32 %v36, 104
    %v74 = vadd.s32 %v36, 112
    %v75 = vadd.s32 %v36, 120
    %v76 = vstv %s60
    %v77 = vadd.s32 %v76, %v36
    %v78 = vadd.s32 %v76, %v61
    %v79 = vadd.s32 %v76, %v62
    %v80 = vadd.s32 %v76, %v63
    %v81 = vadd.s32 %v76, %v64
    %v82 = vadd.s32 %v76, %v65
    %v83 = vadd.s32 %v76, %v66
    %v84 = vadd.s32 %v76, %v67
    %v85 = vadd.s32 %v76, %v68
    %v86 = vadd.s32 %v76, %v69
    %v87 = vadd.s32 %v76, %v70
    %v88 = vadd.s32 %v76, %v71
    %v89 = vadd.s32 %v76, %v72
    %v90 = vadd.s32 %v76, %v73
    %v91 = vadd.s32 %v76, %v74
    %v92 = vadd.s32 %v76, %v75
    %vm93 = vcmp.lt.s32.totalorder %v77, 32
    %vm94 = vcmp.lt.s32.totalorder %v78, 32
    %vm95 = vcmp.lt.s32.totalorder %v79, 32
    %vm96 = vcmp.lt.s32.totalorder %v80, 32
    %vm97 = vcmp.lt.s32.totalorder %v81, 32
    %vm98 = vcmp.lt.s32.totalorder %v82, 32
    %vm99 = vcmp.lt.s32.totalorder %v83, 32
    %vm100 = vcmp.lt.s32.totalorder %v84, 32
    %vm101 = vcmp.lt.s32.totalorder %v85, 32
    %vm102 = vcmp.lt.s32.totalorder %v86, 32
    %vm103 = vcmp.lt.s32.totalorder %v87, 32
    %vm104 = vcmp.lt.s32.totalorder %v88, 32
    %vm105 = vcmp.lt.s32.totalorder %v89, 32
    %vm106 = vcmp.lt.s32.totalorder %v90, 32
    %vm107 = vcmp.lt.s32.totalorder %v91, 32
    %vm108 = vcmp.lt.s32.totalorder %v92, 32
    %v109 = vsel %vm93, 1, 0
    %v110 = vsel %vm94, 1, 0
    %v111 = vsel %vm95, 1, 0
    %v112 = vsel %vm96, 1, 0
    %v113 = vsel %vm97, 1, 0
    %v114 = vsel %vm98, 1, 0
    %v115 = vsel %vm99, 1, 0
    %v116 = vsel %vm100, 1, 0
    %v117 = vsel %vm101, 1, 0
    %v118 = vsel %vm102, 1, 0
    %v119 = vsel %vm103, 1, 0
    %v120 = vsel %vm104, 1, 0
    %v121 = vsel %vm105, 1, 0
    %v122 = vsel %vm106, 1, 0
    %v123 = vsel %vm107, 1, 0
    %v124 = vsel %vm108, 1, 0
    %vm125 = vcmp.eq.s32.totalorder %v109, 1
    %vm126 = vcmp.eq.s32.totalorder %v110, 1
    %vm127 = vcmp.eq.s32.totalorder %v111, 1
    %vm128 = vcmp.eq.s32.totalorder %v112, 1
    %vm129 = vcmp.eq.s32.totalorder %v113, 1
    %vm130 = vcmp.eq.s32.totalorder %v114, 1
    %vm131 = vcmp.eq.s32.totalorder %v115, 1
    %vm132 = vcmp.eq.s32.totalorder %v116, 1
    %vm133 = vcmp.eq.s32.totalorder %v117, 1
    %vm134 = vcmp.eq.s32.totalorder %v118, 1
    %vm135 = vcmp.eq.s32.totalorder %v119, 1
    %vm136 = vcmp.eq.s32.totalorder %v120, 1
    %vm137 = vcmp.eq.s32.totalorder %v121, 1
    %vm138 = vcmp.eq.s32.totalorder %v122, 1
    %vm139 = vcmp.eq.s32.totalorder %v123, 1
    %vm140 = vcmp.eq.s32.totalorder %v124, 1
    %v141 = vsel %vm125, %v44, 0.0
    %v142 = vsel %vm126, %v45, 0.0
    %v143 = vsel %vm127, %v46, 0.0
    %v144 = vsel %vm128, %v47, 0.0
    %v145 = vsel %vm129, %v48, 0.0
    %v146 = vsel %vm130, %v49, 0.0
    %v147 = vsel %vm131, %v50, 0.0
    %v148 = vsel %vm132, %v51, 0.0
    %v149 = vsel %vm133, %v52, 0.0
    %v150 = vsel %vm134, %v53, 0.0
    %v151 = vsel %vm135, %v54, 0.0
    %v152 = vsel %vm136, %v55, 0.0
    %v153 = vsel %vm137, %v56, 0.0
    %v154 = vsel %vm138, %v57, 0.0
    %v155 = vsel %vm139, %v58, 0.0
    %v156 = vsel %vm140, %v59, 0.0
    %v157 = vld [vmem:[#allocation2] sm:$0xff]
    %158 = vmatprep.subr.mxu0 0.0
    %159 = vmatpush1.msra.mxu0 %v156
    %160 = vmatprep.subr.mxu0 0.0
    %161 = vmatpush1.msra.mxu0 %v155
    %162 = vmatprep.subr.mxu0 0.0
    %163 = vmatpush1.msra.mxu0 %v154
    %164 = vmatprep.subr.mxu0 0.0
    %165 = vmatpush1.msra.mxu0 %v153
    %166 = vmatprep.subr.mxu0 0.0
    %167 = vmatpush1.msra.mxu0 %v152
    %168 = vmatprep.subr.mxu0 0.0
    %169 = vmatpush1.msra.mxu0 %v151
    %170 = vmatprep.subr.mxu0 0.0
    %171 = vmatpush1.msra.mxu0 %v150
    %172 = vmatprep.subr.mxu0 0.0
    %173 = vmatpush1.msra.mxu0 %v149
    %174 = vmatprep.subr.mxu0 0.0
    %175 = vmatpush1.msra.mxu0 %v148
    %176 = vmatprep.subr.mxu0 0.0
    %177 = vmatpush1.msra.mxu0 %v147
    %178 = vmatprep.subr.mxu0 0.0
    %179 = vmatpush1.msra.mxu0 %v146
    %180 = vmatprep.subr.mxu0 0.0
    %181 = vmatpush1.msra.mxu0 %v145
    %182 = vmatprep.subr.mxu0 0.0
    %183 = vmatpush1.msra.mxu0 %v144
    %184 = vmatprep.subr.mxu0 0.0
    %185 = vmatpush1.msra.mxu0 %v143
    %186 = vmatprep.subr.mxu0 0.0
    %187 = vmatpush1.msra.mxu0 %v142
    %188 = vmatprep.subr.mxu0 0.0
    %189 = vmatpush1.msra.mxu0 %v141
    %190 = vmatprep.subr.mxu0 0.0
    %191 = vmatpush2.msra.mxu0 0.0
    %192 = vmatprep.subr.mxu0 0.0
    %193 = vmatpush2.msra.mxu0 0.0
    %194 = vmatprep.subr.mxu0 0.0
    %195 = vmatpush2.msra.mxu0 0.0
    %196 = vmatprep.subr.mxu0 0.0
    %197 = vmatpush2.msra.mxu0 0.0
    %198 = vmatprep.subr.mxu0 0.0
    %199 = vmatpush2.msra.mxu0 0.0
    %200 = vmatprep.subr.mxu0 0.0
    %201 = vmatpush2.msra.mxu0 0.0
    %202 = vmatprep.subr.mxu0 0.0
    %203 = vmatpush2.msra.mxu0 0.0
    %204 = vmatprep.subr.mxu0 0.0
    %205 = vmatpush2.msra.mxu0 0.0
    %206 = vmatprep.subr.mxu0 0.0
    %207 = vmatpush2.msra.mxu0 0.0
    %208 = vmatprep.subr.mxu0 0.0
    %209 = vmatpush2.msra.mxu0 0.0
    %210 = vmatprep.subr.mxu0 0.0
    %211 = vmatpush2.msra.mxu0 0.0
    %212 = vmatprep.subr.mxu0 0.0
    %213 = vmatpush2.msra.mxu0 0.0
    %214 = vmatprep.subr.mxu0 0.0
    %215 = vmatpush2.msra.mxu0 0.0
    %216 = vmatprep.subr.mxu0 0.0
    %217 = vmatpush2.msra.mxu0 0.0
    %218 = vmatprep.subr.mxu0 0.0
    %219 = vmatpush2.msra.mxu0 0.0
    %220 = vmatprep.subr.mxu0 0.0
    %221 = vmatpush2.msra.mxu0 0.0
    %222 = vmatprep.mubr.f32.mxu0 0.0
    %223 = vmatmul.mubr.f32.gmra.mxu0 %v43
    %v224 = vpop.f32.mrf.mxu0
    %v225 = vadd.f32 0.0, %v224
    %v226 = vpop.f32.mrf.mxu0
    %227 = vdwg.mxu0
    %v228 = vadd.f32 %v157, %v225
    %229 = vst [vmem:[#allocation2] sm:$0xff] %v228
    // Predicated region
    $region22: #{tpu_custom_call.1} parent=1 // pred_check
      %p230 = pneg %p29
    $region23: #{tpu_custom_call.1} parent=1 // pred_check_branch
      %232 = sbr.rel (%p230) target = $region25
    $region24: #{tpu_custom_call.1} parent=1 // pred_region
      %v233 = vld [vmem:[#allocation2] sm:$0xff]
      %v234 = vld [vmem:[%s1] sm:$0xff]
      %236 = vset.pattern.permute.xlu0 0
      %237 = vperm.xlu0 %236, %v234
      %v238 = vpop.permute.xlu0 %237
      %v240 = vmul.f32 %v233, %v238
      %241 = vst [vmem:[#allocation6] sm:$0xff] %v240
    $region25: #{tpu_custom_call.1} parent=1 // pred_fallthru
      _
    // Predicated region
    $region26: #{tpu_custom_call.1} parent=1 // pred_check
      _
    $region27: #{tpu_custom_call.1} parent=1 // pred_check_branch
      %243 = sbr.rel (0) target = $region29
    $region28: #{tpu_custom_call.1} parent=1 // pred_region
      %s245 = ssub.s32 128, 128
      %246 = vsyncadd [#allocation5], %s245
      %s248 = sshll.u32 [#allocation6], 4
      %s249 = int_to_ptr.vmem [resolvable:$true] %s248
      %251 = dma.vmem_to_hbm [thread:$0]  %s249, 128, %s3, [#allocation5]
    $region29: #{tpu_custom_call.1} parent=1 // pred_fallthru
      _
    // Predicated region
    $region30: #{tpu_custom_call.1} parent=1 // pred_check
      _
    $region31: #{tpu_custom_call.1} parent=1 // pred_check_branch
      %253 = sbr.rel (0) target = $region33
    $region32: #{tpu_custom_call.1} parent=1 // pred_region
      %254 = dma.done [#allocation5], 128
    $region33: #{tpu_custom_call.1} parent=1 // pred_fallthru
      _
    %255 = vsyncpa [#allocation4], 1
    %256 = vsyncpa [#allocation5], 1

</llo_original>
